<compile_context>
chip_gen: v7x
topology: tpu7x:2x2x1
jax: 0.10.0
libtpu: 0.0.40
codegen_flags: <defaults>
</compile_context>

<pallas_src>
import functools

import numpy as np
import jax
import jax.numpy as jnp
from jax import lax
from jax.experimental import pallas as pl
from jax.experimental.pallas import tpu as pltpu


def _clamp_vmem(nbytes):
    # Headroom + clamp into a range valid on v5e/v6e/v7x.
    return int(min(max(nbytes + (2 << 20), 8 << 20), 64 << 20))


def _normalize_kernel(x_ref, o_ref):
    """Row-wise L2 normalize (F.normalize(..., dim=1, p=2)), emit bf16 for the MXU."""
    x = x_ref[...].astype(jnp.float32)                         # [tm1, D]
    ssq = jnp.sum(x * x, axis=1, keepdims=True)                # [tm1, 1]
    # x / max(||x||, 1e-12)  ==  x * rsqrt(max(||x||^2, 1e-24)); rsqrt goes to the EUP.
    inv = lax.rsqrt(jnp.maximum(ssq, jnp.float32(1e-24)))
    o_ref[...] = (x * inv).astype(o_ref.dtype)


def _supcon_sim_loss_kernel(fn_ref, counts_ref, out_ref, *, temperature, n, n_pad, block_m):
    """Per-row-block partial loss. fn_ref/counts_ref are fully VMEM-resident."""
    i = pl.program_id(0)
    row0 = pl.multiple_of(i * block_m, block_m)

    inv_t2 = jnp.float32(1.0 / (temperature * temperature))    # fold both /T divides
    log_nm1 = jnp.float32(np.log(n - 1))

    # LHS rows are sliced out of the resident array -- no second DMA stream.
    lhs = fn_ref[pl.ds(row0, block_m), :]                       # [tm, D] bf16
    # z[t, k] = <fn[row_t], fn[k]> / T^2  (bf16 x bf16 -> f32 on the MXU).
    z = lax.dot_general(lhs, fn_ref[...],
                        (((1,), (1,)), ((), ())),
                        preferred_element_type=jnp.float32) * inv_t2   # [tm, n_pad]

    # Off-diagonal mask built from a single [tm, 1] row iota broadcast against the
    # column iota; padded columns are excluded only when padding exists.
    k = lax.broadcasted_iota(jnp.int32, (block_m, n_pad), 1)
    r_col = i * block_m + lax.broadcasted_iota(jnp.int32, (block_m, 1), 0)
    valid = k != r_col
    if n_pad != n:
        valid = valid & (k < n)

    # log-softmax over the replicated j axis (N-1 identical entries):
    #   log(exp(z) / sum_j exp(z)) = z - (z + log(N-1))
    logp = z - (z + log_nm1)
    rowsum = jnp.sum(jnp.where(valid, logp, jnp.float32(0.0)),
                     axis=1, keepdims=True)                     # [tm, 1]

    # count_r precomputed in JAX (0 for padded rows), sliced per block.
    counts = counts_ref[pl.ds(row0, block_m), :]                # [tm, 1] f32
    partial = jnp.sum(counts * rowsum)
    scale = jnp.float32(-(n - 1) / n)   # j axis contributes (N-1); divide by N
    out_ref[...] = jnp.reshape(scale * partial, (1, 1, 1))


def supervised_contrastive_loss_sim(features, labels, temperature=0.07, block_m=256):
    """Forward pass of SupervisedContrastiveLossSIM.

    block_m: row tile for the loss pass (128 on v5e, 256+ on v6e/v7x).
    Labels outside [0, N) are dropped by the count reweighting (PyTorch would raise).
    """
    n, d = features.shape
    assert n >= 2, "need at least 2 samples (N-1 off-diagonal columns)"

    # Pad rows to a multiple of the row tile (and of the 8-sublane granularity).
    n8 = max(8, ((n + 7) // 8) * 8)
    tm = min(block_m, n8)
    n_pad = ((n8 + tm - 1) // tm) * tm
    grid_m = n_pad // tm

    feats = features.astype(jnp.float32)
    if n_pad != n:
        feats = jnp.pad(feats, ((0, n_pad - n), (0, 0)))        # zero rows -> zero fn rows

    # count_r = #{ i : labels[i] == r }, precomputed once (padded rows get 0).
    counts = jnp.bincount(labels.astype(jnp.int32), length=n).astype(jnp.float32)
    counts = counts.reshape(n, 1)
    if n_pad != n:
        counts = jnp.pad(counts, ((0, n_pad - n), (0, 0)))

    # Pass 1: L2-normalize rows, output bf16 (halves HBM traffic, MXU-native).
    # Pure bandwidth pass -> use the largest row tile that divides n_pad.
    tm1 = tm
    for cand in (1024, 512, 256):
        if cand <= n_pad and n_pad % cand == 0:
            tm1 = cand
            break
    fn = pl.pallas_call(
        _normalize_kernel,
        out_shape=jax.ShapeDtypeStruct((n_pad, d), jnp.bfloat16),
        grid=(n_pad // tm1,),
        in_specs=[pl.BlockSpec((tm1, d), lambda i: (i, 0))],
        out_specs=pl.BlockSpec((tm1, d), lambda i: (i, 0)),
        compiler_params=pltpu.CompilerParams(
            dimension_semantics=("parallel",),
            vmem_limit_bytes=_clamp_vmem(2 * tm1 * d * 4 + 2 * tm1 * d * 2 + 2 * tm1 * d * 4),
        ),
    )(feats)

    # Pass 2: row-block-tiled loss. The normalized matrix and the counts column are
    # fully VMEM-resident (single copy, no pipeline double-buffering); each grid
    # step writes its own partial so the row axis can be sharded across cores.
    # For very large N on v7x, add a column-tile grid axis over fn instead of
    # keeping it fully resident.
    kernel = functools.partial(_supcon_sim_loss_kernel,
                               temperature=float(temperature),
                               n=n, n_pad=n_pad, block_m=tm)
    vmem2 = (n_pad * d * 2            # resident bf16 fn
             + n_pad * 128 * 4        # resident counts (lane-padded)
             + 6 * tm * n_pad * 4     # z / logp / mask / select temporaries
             + 2 * tm * d * 2)        # LHS slice
    partials = pl.pallas_call(
        kernel,
        out_shape=jax.ShapeDtypeStruct((grid_m, 1, 1), jnp.float32),
        grid=(grid_m,),
        in_specs=[
            pl.BlockSpec(memory_space=pltpu.MemorySpace.VMEM),   # fn: resident, single copy
            pl.BlockSpec(memory_space=pltpu.MemorySpace.VMEM),   # counts: resident
        ],
        out_specs=pl.BlockSpec((1, 1, 1), lambda i: (i, 0, 0)),
        compiler_params=pltpu.CompilerParams(
            dimension_semantics=("parallel",),
            vmem_limit_bytes=_clamp_vmem(vmem2),
        ),
    )(fn, counts)
    return jnp.sum(partials)


def _reference_numpy(features, labels, temperature=0.07):
    """Direct NumPy transcription of the PyTorch forward (sanity check)."""
    f = np.asarray(features, np.float32)
    lab = np.asarray(labels)
    n = f.shape[0]
    fn = f / np.maximum(np.linalg.norm(f, axis=1, keepdims=True), 1e-12)
    s = (fn @ fn.T) / temperature
    od = s[~np.eye(n, dtype=bool)].reshape(n, n - 1)
    pp = np.broadcast_to(od[lab][:, None, :], (n, n - 1, n - 1))
    e = np.exp(pp / temperature)
    logp = np.log(e / e.sum(axis=1, keepdims=True))
    return -logp.sum() / n


if __name__ == "__main__":
    key = jax.random.PRNGKey(0)
    kf, kl = jax.random.split(key)

    N, D, NUM_CLASSES = 8, 128, 4
    features = jax.random.normal(kf, (N, D), dtype=jnp.float32)
    labels = jax.random.randint(kl, (N,), 0, NUM_CLASSES, dtype=jnp.int32)

    loss = supervised_contrastive_loss_sim(features, labels, temperature=0.07)
    loss = jax.block_until_ready(loss)

    ref = _reference_numpy(np.asarray(features), np.asarray(labels), 0.07)
    assert np.allclose(np.asarray(loss), ref, rtol=1e-4, atol=1e-4), (loss, ref)

    print("KERNEL_OK")
</pallas_src>

<mosaic_0001>
module attributes {stable_mosaic.version = 11 : i64} {
  func.func @_normalize_kernel(%arg0: i32, %arg1: memref<8x128xf32, #tpu.memory_space<vmem>>, %arg2: memref<8x128xbf16, #tpu.memory_space<vmem>>) attributes {dimension_semantics = [#tpu.dimension_semantics<parallel>], iteration_bounds = array<i64: 1>, scalar_prefetch = 0 : i64, scratch_operands = 0 : i64, tpu.core_type = #tpu.core_type<tc>, window_params = [{transform_indices = @transform_0, window_bounds = array<i64: 8, 128>}, {transform_indices = @transform_1, window_bounds = array<i64: 8, 128>}]} {
    %c0 = arith.constant 0 : index
    %c0_0 = arith.constant 0 : index
    %0 = vector.load %arg1[%c0, %c0_0] : memref<8x128xf32, #tpu.memory_space<vmem>>, vector<8x128xf32>
    %1 = arith.mulf %0, %0 : vector<8x128xf32>
    %cst = arith.constant dense<0.000000e+00> : vector<8xf32>
    %2 = vector.multi_reduction <add>, %1, %cst [1] : vector<8x128xf32> to vector<8xf32>
    %3 = vector.shape_cast %2 : vector<8xf32> to vector<8x1xf32>
    %cst_1 = arith.constant 1.000000e-24 : f32
    %4 = vector.broadcast %cst_1 : f32 to vector<8x1xf32>
    %5 = arith.maximumf %3, %4 : vector<8x1xf32>
    %6 = math.rsqrt %5 : vector<8x1xf32>
    %7 = vector.broadcast %6 : vector<8x1xf32> to vector<8x128xf32>
    %8 = arith.mulf %0, %7 : vector<8x128xf32>
    %9 = arith.truncf %8 : vector<8x128xf32> to vector<8x128xbf16>
    %c0_2 = arith.constant 0 : index
    %c0_3 = arith.constant 0 : index
    %10 = vector.load %arg2[%c0_2, %c0_3] : memref<8x128xbf16, #tpu.memory_space<vmem>>, vector<8x128xbf16>
    tpu.vector_store %arg2[%c0_2, %c0_3], %9 {strides = array<i32>} : memref<8x128xbf16, #tpu.memory_space<vmem>>, vector<8x128xbf16>,
    return
  }
  func.func @transform_0(%arg0: i32) -> (i32, i32) {
    %c0_i32 = arith.constant 0 : i32
    %c0_i32_0 = arith.constant 0 : i32
    return %arg0, %c0_i32 : i32, i32
  }
  func.func @transform_1(%arg0: i32) -> (i32, i32) {
    %c0_i32 = arith.constant 0 : i32
    %c0_i32_0 = arith.constant 0 : i32
    return %arg0, %c0_i32 : i32, i32
  }
}

</mosaic_0001>

<llo_original>
// kernel: tpu_custom_call.1
$region0: #{tpu_custom_call.1}
  #allocation0 [shape = 'u32[]', space=smem, size = 0x4, offset = 0x4, fixed_abs, tag = 'smem constant byte address 0x4 - core index']
  #allocation1 [shape = 'u32[144,128]{1,0:T(1,128)}', space=vmem, size = 0x12000, scoped, tag = 'internal scratch']
  %s0 = inlined_call_operand.hbm [shape: f32[8,128], index: 0, kind: input, shape index: {}]
  %s1 = inlined_call_operand.hbm [shape: bf16[8,128], index: 1, kind: output, shape index: {}]
  %s2 = sld [smem:[#allocation0]]
  $region18: #{tpu_custom_call.1} parent=0
    _
  %s4 = ssub.s32 1, %s2
  %s5 = scalar_select 0, %s4, %s2
  $region1: #{tpu_custom_call.1} parent=0
    #allocation2 [shape = 'u8[4096]{0}', space=vmem, size = 0x1000, scoped, tag = 'input window, operand 0, single buffered']
    #allocation3 [shape = 's32[1]{0}', space=sflag, size = 0x4, scoped, tag = 'scoped memory for tpu_custom_call.1']
    #allocation4 [shape = 's32[1]{0}', space=sflag, size = 0x4, scoped, tag = 'scoped memory for tpu_custom_call.1']
    #allocation5 [shape = 'u8[2048]{0}', space=vmem, size = 0x800, scoped, tag = 'output window, operand 0, single buffered']
    %6 = vsyncpa [#allocation3], 0
    %7 = vsyncpa [#allocation4], 0
    // Predicated region
    $region2: #{tpu_custom_call.1} parent=1 // pred_check
      _
    $region3: #{tpu_custom_call.1} parent=1 // pred_check_branch
      %9 = sbr.rel (0) target = $region5
    $region4: #{tpu_custom_call.1} parent=1 // pred_region
      %s11 = ssub.s32 128, 128
      %12 = vsyncadd [#allocation3], %s11
      %s14 = sshll.u32 [#allocation2], 4
      %s15 = int_to_ptr.vmem [resolvable:$true] %s14
      %17 = dma.hbm_to_vmem [thread:$0]  %s0, 128, %s15, [#allocation3]
    $region5: #{tpu_custom_call.1} parent=1 // pred_fallthru
      _
    // Predicated region
    $region6: #{tpu_custom_call.1} parent=1 // pred_check
      _
    $region7: #{tpu_custom_call.1} parent=1 // pred_check_branch
      %19 = sbr.rel (0) target = $region9
    $region8: #{tpu_custom_call.1} parent=1 // pred_region
      %20 = dma.done [#allocation3], 128
    $region9: #{tpu_custom_call.1} parent=1 // pred_fallthru
      _
    %v21 = vld [vmem:[#allocation2] sm:$0xff]
    %v22 = vmul.f32 %v21, %v21
    %23 = vadd.xlane.f32.xlu0 %v22
    %v24 = vpop.xlane.xlu0 %23
    %v25 = vmax.f32 %v24, 1e-24
    %v26 = vrsqrt.pop %v25
    %v27 = vmul.f32 %v21, %v26
    %v28 = vpack.c.bf16 %v27, %v27
    %29 = vst [vmem:[#allocation5] sm:$0xf] %v28
    // Predicated region
    $region10: #{tpu_custom_call.1} parent=1 // pred_check
      _
    $region11: #{tpu_custom_call.1} parent=1 // pred_check_branch
      %31 = sbr.rel (0) target = $region13
    $region12: #{tpu_custom_call.1} parent=1 // pred_region
      %s33 = ssub.s32 64, 64
      %34 = vsyncadd [#allocation4], %s33
      %s36 = sshll.u32 [#allocation5], 4
      %s37 = int_to_ptr.vmem [resolvable:$true] %s36
      %39 = dma.vmem_to_hbm [thread:$0]  %s37, 64, %s1, [#allocation4]
    $region13: #{tpu_custom_call.1} parent=1 // pred_fallthru
      _
    // Predicated region
    $region14: #{tpu_custom_call.1} parent=1 // pred_check
      _
    $region15: #{tpu_custom_call.1} parent=1 // pred_check_branch
      %41 = sbr.rel (0) target = $region17
    $region16: #{tpu_custom_call.1} parent=1 // pred_region
      %42 = dma.done [#allocation4], 64
    $region17: #{tpu_custom_call.1} parent=1 // pred_fallthru
      _
    %43 = vsyncpa [#allocation3], 1
    %44 = vsyncpa [#allocation4], 1

</llo_original>
